<compile_context>
chip_gen: v6e
topology: v6e:2x2x1
jax: 0.10.0
libtpu: 0.0.40
codegen_flags: <defaults>
</compile_context>

<pallas_src>
import jax
import jax.numpy as jnp
from jax.experimental import pallas as pl
from jax.experimental.pallas import tpu as pltpu

EPS = 1e-7

_ROW_BLOCK_CAP = 256      # sublane-dim cap (multiple of 8)
_COL_BLOCK_CAP = 2048     # lane-dim cap (multiple of 128)  -> <= 2 MiB f32 per block


def _pick_block(dim: int, multiple: int, cap: int) -> int:
    """Largest divisor of `dim` that is a multiple of `multiple` and <= cap.

    Falls back to the full extent (always legal for a BlockSpec) when no such
    divisor exists (e.g. dim < multiple or dim not a multiple of `multiple`).
    """
    best = None
    d = multiple
    limit = min(dim, cap)
    while d <= limit:
        if dim % d == 0:
            best = d
        d += multiple
    return dim if best is None else best


def _darts_kernel(s_ref, x_ref, o_ref):
    # x_ref: (row_block, col_block) tile of the [N*C, H*W] slab
    # s_ref: (row_block, 1) per-row sigmoid(beta), broadcast over the lane dim
    x = x_ref[...]
    y = jnp.log(jnp.abs(x) + EPS)                 # unary: Log
    s = s_ref[...]                                # (rows, 1) -> broadcasts over lanes
    o_ref[...] = s * y + (1.0 - s) * y            # binary: BetaMix over stack([y, y])


def darts_func_simple(x_nchw: jax.Array, beta: jax.Array) -> jax.Array:
    """x_nchw: [N, C, H, W] float32, beta: [C] float32 -> [N, C, H, W]."""
    N, C, H, W = x_nchw.shape
    rows, cols = N * C, H * W

    # Natural NCHW layout, viewed as a 2D slab (free reshape, no transpose).
    x_slab = x_nchw.reshape(rows, cols).astype(jnp.float32)

    # Hoist the sigmoid out of the kernel; tile per (n, c) row: row r = n*C + c -> s[c].
    s = jax.nn.sigmoid(beta.astype(jnp.float32))          # (C,)
    s_col = jnp.tile(s, (N,)).reshape(rows, 1)            # (N*C, 1)

    row_block = _pick_block(rows, 8, _ROW_BLOCK_CAP)
    col_block = _pick_block(cols, 128, _COL_BLOCK_CAP)
    grid = (rows // row_block, cols // col_block)

    out_slab = pl.pallas_call(
        _darts_kernel,
        out_shape=jax.ShapeDtypeStruct((rows, cols), jnp.float32),
        grid_spec=pltpu.PrefetchScalarGridSpec(
            num_scalar_prefetch=0,
            grid=grid,
            in_specs=[
                pl.BlockSpec((row_block, 1), lambda i, j: (i, 0)),          # s column
                pl.BlockSpec((row_block, col_block), lambda i, j: (i, j)),  # x tile
            ],
            out_specs=pl.BlockSpec((row_block, col_block), lambda i, j: (i, j)),
        ),
        compiler_params=pltpu.CompilerParams(
            dimension_semantics=("parallel", "parallel"),
        ),
    )(s_col, x_slab)

    return out_slab.reshape(N, C, H, W)


def _reference(x_nchw, beta):
    # Mirrors the PyTorch module: y = Log(x); BetaMix(stack([y, y])).
    y = jnp.log(jnp.abs(x_nchw) + EPS)
    s = jax.nn.sigmoid(beta).reshape(1, -1, 1, 1)
    return s * y + (1.0 - s) * y


if __name__ == "__main__":
    key = jax.random.PRNGKey(0)
    k1, k2 = jax.random.split(key)

    N, C, H, W = 2, 4, 16, 16
    x = jax.random.normal(k1, (N, C, H, W), dtype=jnp.float32)
    # deterministic per-channel beta parameter (BetaMix(channels=C))
    beta = jax.random.normal(k2, (C,), dtype=jnp.float32) * 0.1

    out = jax.block_until_ready(darts_func_simple(x, beta))

    ref = _reference(x, beta)
    assert out.shape == (N, C, H, W)
    assert jnp.allclose(out, ref, atol=1e-5, rtol=1e-5), "mismatch vs reference"

    print("KERNEL_OK")
</pallas_src>

<mosaic_0001>
module attributes {stable_mosaic.version = 11 : i64} {
  func.func @_darts_kernel(%arg0: i32, %arg1: i32, %arg2: memref<8x1xf32, #tpu.memory_space<vmem>>, %arg3: memref<8x256xf32, #tpu.memory_space<vmem>>, %arg4: memref<8x256xf32, #tpu.memory_space<vmem>>) attributes {dimension_semantics = [#tpu.dimension_semantics<parallel>, #tpu.dimension_semantics<parallel>], iteration_bounds = array<i64: 1, 1>, scalar_prefetch = 0 : i64, scratch_operands = 0 : i64, tpu.core_type = #tpu.core_type<tc>, window_params = [{transform_indices = @transform_0, window_bounds = array<i64: 8, 1>}, {transform_indices = @transform_1, window_bounds = array<i64: 8, 256>}, {transform_indices = @transform_2, window_bounds = array<i64: 8, 256>}]} {
    %c0 = arith.constant 0 : index
    %c0_0 = arith.constant 0 : index
    %0 = vector.load %arg3[%c0, %c0_0] : memref<8x256xf32, #tpu.memory_space<vmem>>, vector<8x256xf32>
    %1 = math.absf %0 : vector<8x256xf32>
    %cst = arith.constant 1.000000e-07 : f32
    %2 = vector.broadcast %cst : f32 to vector<8x256xf32>
    %3 = arith.addf %1, %2 : vector<8x256xf32>
    %4 = math.log %3 : vector<8x256xf32>
    %c0_1 = arith.constant 0 : index
    %c0_2 = arith.constant 0 : index
    %5 = vector.load %arg2[%c0_1, %c0_2] : memref<8x1xf32, #tpu.memory_space<vmem>>, vector<8x1xf32>
    %6 = vector.broadcast %5 : vector<8x1xf32> to vector<8x256xf32>
    %7 = arith.mulf %6, %4 : vector<8x256xf32>
    %cst_3 = arith.constant 1.000000e+00 : f32
    %8 = vector.broadcast %cst_3 : f32 to vector<8x1xf32>
    %9 = arith.subf %8, %5 : vector<8x1xf32>
    %10 = vector.broadcast %9 : vector<8x1xf32> to vector<8x256xf32>
    %11 = arith.mulf %10, %4 : vector<8x256xf32>
    %12 = arith.addf %7, %11 : vector<8x256xf32>
    %c0_4 = arith.constant 0 : index
    %c0_5 = arith.constant 0 : index
    %13 = vector.load %arg4[%c0_4, %c0_5] : memref<8x256xf32, #tpu.memory_space<vmem>>, vector<8x256xf32>
    tpu.vector_store %arg4[%c0_4, %c0_5], %12 {strides = array<i32>} : memref<8x256xf32, #tpu.memory_space<vmem>>, vector<8x256xf32>,
    return
  }
  func.func @transform_0(%arg0: i32, %arg1: i32) -> (i32, i32) {
    %c0_i32 = arith.constant 0 : i32
    %c0_i32_0 = arith.constant 0 : i32
    return %arg0, %c0_i32 : i32, i32
  }
  func.func @transform_1(%arg0: i32, %arg1: i32) -> (i32, i32) {
    %c0_i32 = arith.constant 0 : i32
    return %arg0, %arg1 : i32, i32
  }
  func.func @transform_2(%arg0: i32, %arg1: i32) -> (i32, i32) {
    %c0_i32 = arith.constant 0 : i32
    return %arg0, %arg1 : i32, i32
  }
}

</mosaic_0001>

<llo_original>
// kernel: tpu_custom_call.1
$region0: #{tpu_custom_call.1}
  #allocation0 [shape = 'u32[]', space=smem, size = 0x4, offset = 0x4, fixed_abs, tag = 'smem constant byte address 0x4 - core index']
  #allocation1 [shape = 'u32[144,128]{1,0:T(1,128)}', space=vmem, size = 0x12000, scoped, tag = 'internal scratch']
  %s0 = inlined_call_operand.vmem [shape: f32[8,1], index: 0, kind: input, shape index: {}]
  %s1 = inlined_call_operand.hbm [shape: f32[8,256], index: 1, kind: input, shape index: {}]
  %s2 = inlined_call_operand.hbm [shape: f32[8,256], index: 2, kind: output, shape index: {}]
  %s3 = sld [smem:[#allocation0]]
  $region22: #{tpu_custom_call.1} parent=0
    _
  %s5 = ssub.s32 1, %s3
  %s6 = scalar_select 0, %s5, %s3
  $region1: #{tpu_custom_call.1} parent=0
    #allocation2 [shape = 'u8[8192]{0}', space=vmem, size = 0x2000, scoped, tag = 'input window, operand 1, single buffered']
    #allocation3 [shape = 's32[1]{0}', space=sflag, size = 0x4, scoped, tag = 'scoped memory for tpu_custom_call.1']
    #allocation4 [shape = 's32[1]{0}', space=sflag, size = 0x4, scoped, tag = 'scoped memory for tpu_custom_call.1']
    #allocation5 [shape = 'u8[8192]{0}', space=vmem, size = 0x2000, scoped, tag = 'output window, operand 0, single buffered']
    %7 = vsyncpa [#allocation3], 0
    %8 = vsyncpa [#allocation4], 0
    // Predicated region
    $region2: #{tpu_custom_call.1} parent=1 // pred_check
      _
    $region3: #{tpu_custom_call.1} parent=1 // pred_check_branch
      %10 = sbr.rel (0) target = $region5
    $region4: #{tpu_custom_call.1} parent=1 // pred_region
      _
    $region5: #{tpu_custom_call.1} parent=1 // pred_fallthru
      _
    // Predicated region
    $region6: #{tpu_custom_call.1} parent=1 // pred_check
      _
    $region7: #{tpu_custom_call.1} parent=1 // pred_check_branch
      %12 = sbr.rel (0) target = $region9
    $region8: #{tpu_custom_call.1} parent=1 // pred_region
      %s14 = ssub.s32 256, 256
      %15 = vsyncadd [#allocation3], %s14
      %s17 = sshll.u32 [#allocation2], 4
      %s18 = int_to_ptr.vmem [resolvable:$true] %s17
      %20 = dma.hbm_to_vmem [thread:$0]  %s1, 256, %s18, [#allocation3]
    $region9: #{tpu_custom_call.1} parent=1 // pred_fallthru
      _
    // Predicated region
    $region10: #{tpu_custom_call.1} parent=1 // pred_check
      _
    $region11: #{tpu_custom_call.1} parent=1 // pred_check_branch
      %22 = sbr.rel (0) target = $region13
    $region12: #{tpu_custom_call.1} parent=1 // pred_region
      %23 = dma.done [#allocation3], 256
    $region13: #{tpu_custom_call.1} parent=1 // pred_fallthru
      _
    %v24 = vld [vmem:[#allocation2] sm:$0xff]
    %v25 = vld [vmem:[#allocation2 + $0x8] sm:$0xff]
    %v26 = vand.u32 2147483647, %v24
    %v27 = vand.u32 2147483647, %v25
    %v28 = vadd.f32 %v26, 1e-07
    %v29 = vadd.f32 %v27, 1e-07
    %v30 = vlog2.pop %v28
    %v31 = vmul.f32 %v30, 0.6931472
    %v32 = vlog2.pop %v29
    %v33 = vmul.f32 %v32, 0.6931472
    %v34 = vld [vmem:[%s0] sm:$0xff]
    %36 = vset.pattern.permute.xlu0 0
    %37 = vperm.xlu0 %36, %v34
    %v38 = vpop.permute.xlu0 %37
    %v40 = vmul.f32 %v38, %v31
    %v41 = vmul.f32 %v38, %v33
    %v42 = vsub.f32 1.0, %v34
    %44 = vset.pattern.permute.xlu0 0
    %45 = vperm.xlu0 %44, %v42
    %v46 = vpop.permute.xlu0 %45
    %v48 = vmul.f32 %v46, %v31
    %v49 = vmul.f32 %v46, %v33
    %v50 = vadd.f32 %v40, %v48
    %v51 = vadd.f32 %v41, %v49
    %52 = vst [vmem:[#allocation5] sm:$0xff] %v50
    %53 = vst [vmem:[#allocation5 + $0x8] sm:$0xff] %v51
    // Predicated region
    $region14: #{tpu_custom_call.1} parent=1 // pred_check
      _
    $region15: #{tpu_custom_call.1} parent=1 // pred_check_branch
      %55 = sbr.rel (0) target = $region17
    $region16: #{tpu_custom_call.1} parent=1 // pred_region
      %s57 = ssub.s32 256, 256
      %58 = vsyncadd [#allocation4], %s57
      %s60 = sshll.u32 [#allocation5], 4
      %s61 = int_to_ptr.vmem [resolvable:$true] %s60
      %63 = dma.vmem_to_hbm [thread:$0]  %s61, 256, %s2, [#allocation4]
    $region17: #{tpu_custom_call.1} parent=1 // pred_fallthru
      _
    // Predicated region
    $region18: #{tpu_custom_call.1} parent=1 // pred_check
      _
    $region19: #{tpu_custom_call.1} parent=1 // pred_check_branch
      %65 = sbr.rel (0) target = $region21
    $region20: #{tpu_custom_call.1} parent=1 // pred_region
      %66 = dma.done [#allocation4], 256
    $region21: #{tpu_custom_call.1} parent=1 // pred_fallthru
      _
    %67 = vsyncpa [#allocation3], 1
    %68 = vsyncpa [#allocation4], 1

</llo_original>
